<compile_context>
chip_gen: v5e
topology: v5e:2x2
jax: 0.10.0
libtpu: 0.0.40
codegen_flags: <defaults>
</compile_context>

<pallas_src>
import math

import jax
import jax.numpy as jnp
from jax.experimental import pallas as pl
from jax.experimental.pallas import tpu as pltpu


def _copy_kernel(x_ref, o_ref):
    # Pure forward of AttnGrad: return attn_weights unchanged.
    o_ref[...] = x_ref[...]


def attn_grad_forward(attn_weights: jax.Array, attn_grad_buffer: jax.Array | None = None) -> jax.Array:
    """Forward pass of AttnGrad (identity over the attention weights).

    attn_weights: any-shape float array, e.g. (B, H, Sq, Sk).
    attn_grad_buffer: (H,) buffer — unused in forward, exactly like PyTorch.
    """
    del attn_grad_buffer  # not read in forward (hook bookkeeping only)

    orig_shape = attn_weights.shape
    dtype = attn_weights.dtype
    n = math.prod(orig_shape)
    itemsize = jnp.dtype(dtype).itemsize

    # --- lane-dense 2D layout: (rows, lanes) with lanes a multiple of 128 ---
    lanes = next((c for c in (2048, 1024, 512, 256, 128) if n % c == 0), None)
    if lanes is None:
        # Ragged total size: keep the original last dim as the lane dim
        # (block last dim == full array dim is always legal).
        lanes = orig_shape[-1]
    rows = n // lanes
    x2d = attn_weights.reshape(rows, lanes)

    # Sublane packing factor: 8 rows for 32-bit, 16 for bf16, 32 for 8-bit.
    sub = 8 * max(1, 4 // itemsize)

    # Row-tile size: biggest tile <= ~2 MiB. With input + output double
    # buffered that is <= 8 MiB of VMEM — safe under the default scoped VMEM
    # limit on every generation (v5e 16 MiB, v6e/v7x 32 MiB), no vmem_limit
    # override needed.
    target_tile_bytes = 2 * 1024 * 1024
    tm = min(rows, max(sub, target_tile_bytes // (lanes * itemsize)))
    if tm % sub != 0:
        # Either cover all rows in one block (block dim == full dim is legal)
        # or round down to a multiple of the sublane pack factor.
        tm = rows if rows <= sub else (tm // sub) * sub

    grid = (pl.cdiv(rows, tm),)
    spec = pl.BlockSpec((tm, lanes), lambda i: (i, 0))

    out2d = pl.pallas_call(
        _copy_kernel,
        out_shape=jax.ShapeDtypeStruct((rows, lanes), dtype),
        grid_spec=pl.GridSpec(grid=grid, in_specs=[spec], out_specs=spec),
        # Identity op: alias output to input so no extra HBM buffer / round
        # trip is required when the input is dead after this call.
        input_output_aliases={0: 0},
        compiler_params=pltpu.CompilerParams(
            dimension_semantics=("parallel",),
        ),
        cost_estimate=pl.CostEstimate(
            flops=0, transcendentals=0, bytes_accessed=2 * n * itemsize
        ),
    )(x2d)

    return out2d.reshape(orig_shape)


class AttnGradPallas:
    """Thin JAX-side analogue of the PyTorch AttnGrad module."""

    def __init__(self, num_heads: int):
        # Deterministic buffer init, mirroring torch.zeros(num_heads).
        # TODO(synk): the per-head gradient bookkeeping (a backward hook that
        # writes into attn_grad in the training script) is not reproduced here;
        # the forward pass itself never reads or writes this buffer.
        self.attn_grad = jnp.zeros((num_heads,), dtype=jnp.float32)

    def __call__(self, attn_weights: jax.Array) -> jax.Array:
        return attn_grad_forward(attn_weights, self.attn_grad)


if __name__ == "__main__":
    key = jax.random.PRNGKey(0)
    B, H, S = 2, 4, 8  # batch, num_heads, seq_len

    # Synthetic attention weights: softmax over the last axis for realism.
    logits = jax.random.normal(key, (B, H, S, S), dtype=jnp.float32)
    expected = jax.nn.softmax(logits, axis=-1)
    # Fresh array fed to the kernel so the input/output aliasing inside
    # pallas_call can never invalidate the reference we compare against.
    attn_weights = expected + 0.0

    module = AttnGradPallas(num_heads=H)
    out = module(attn_weights)
    out = jax.block_until_ready(out)

    assert out.shape == expected.shape
    assert out.dtype == expected.dtype
    assert bool(jnp.allclose(out, expected)), "identity forward mismatch"

    print("KERNEL_OK")
</pallas_src>

<mosaic_0001>
module attributes {stable_mosaic.version = 11 : i64} {
  func.func @_copy_kernel(%arg0: i32, %arg1: memref<1x512xf32, #tpu.memory_space<vmem>>, %arg2: memref<1x512xf32, #tpu.memory_space<vmem>>) attributes {dimension_semantics = [#tpu.dimension_semantics<parallel>], iteration_bounds = array<i64: 1>, scalar_prefetch = 0 : i64, scratch_operands = 0 : i64, tpu.core_type = #tpu.core_type<tc>, window_params = [{transform_indices = @transform_0, window_bounds = array<i64: 1, 512>}, {transform_indices = @transform_1, window_bounds = array<i64: 1, 512>}]} {
    %c0 = arith.constant 0 : index
    %c0_0 = arith.constant 0 : index
    %0 = vector.load %arg1[%c0, %c0_0] : memref<1x512xf32, #tpu.memory_space<vmem>>, vector<1x512xf32>
    %c0_1 = arith.constant 0 : index
    %c0_2 = arith.constant 0 : index
    %1 = vector.load %arg2[%c0_1, %c0_2] : memref<1x512xf32, #tpu.memory_space<vmem>>, vector<1x512xf32>
    tpu.vector_store %arg2[%c0_1, %c0_2], %0 {strides = array<i32>} : memref<1x512xf32, #tpu.memory_space<vmem>>, vector<1x512xf32>,
    return
  }
  func.func @transform_0(%arg0: i32) -> (i32, i32) {
    %c0_i32 = arith.constant 0 : i32
    %c0_i32_0 = arith.constant 0 : i32
    return %arg0, %c0_i32 : i32, i32
  }
  func.func @transform_1(%arg0: i32) -> (i32, i32) {
    %c0_i32 = arith.constant 0 : i32
    %c0_i32_0 = arith.constant 0 : i32
    return %arg0, %c0_i32 : i32, i32
  }
}

</mosaic_0001>

<llo_original>
// kernel: tpu_custom_call.1
$region0: #{tpu_custom_call.1}
  #allocation0 [shape = 'u32[]', space=smem, size = 0x4, offset = 0x4, fixed_abs, tag = 'smem constant byte address 0x4 - core index']
  #allocation1 [shape = 'u32[72,128]{1,0:T(1,128)}', space=vmem, size = 0x9000, scoped, tag = 'internal scratch']
  %s0 = inlined_call_operand.hbm [shape: f32[1,512], index: 0, kind: input, shape index: {}, may-alias: {0,1}]
  %s1 = inlined_call_operand.hbm [shape: f32[1,512], index: 1, kind: output, shape index: {}, may-alias: {0,1}]
  %s2 = sld [smem:[#allocation0]]
  $region18: #{tpu_custom_call.1} parent=0
    _
  %s4 = ssub.s32 1, %s2
  %s5 = scalar_select 0, %s4, %s2
  $region1: #{tpu_custom_call.1} parent=0
    #allocation2 [shape = 'u8[2048]{0}', space=vmem, size = 0x800, scoped, tag = 'input window, operand 0, single buffered']
    #allocation3 [shape = 's32[1]{0}', space=sflag, size = 0x4, scoped, tag = 'scoped memory for tpu_custom_call.1']
    #allocation4 [shape = 's32[1]{0}', space=sflag, size = 0x4, scoped, tag = 'scoped memory for tpu_custom_call.1']
    #allocation5 [shape = 'u8[2048]{0}', space=vmem, size = 0x800, scoped, tag = 'output window, operand 0, single buffered']
    %6 = vsyncpa [#allocation3], 0
    %7 = vsyncpa [#allocation4], 0
    // Predicated region
    $region2: #{tpu_custom_call.1} parent=1 // pred_check
      _
    $region3: #{tpu_custom_call.1} parent=1 // pred_check_branch
      %9 = sbr.rel (0) target = $region5
    $region4: #{tpu_custom_call.1} parent=1 // pred_region
      %11 = vsyncadd [#allocation3], 0
      %s13 = sshll.u32 %s0, 4
      %s14 = int_to_ptr.hbm [resolvable:$true] %s13
      %s15 = sshll.u32 [#allocation2], 4
      %s16 = int_to_ptr.vmem [resolvable:$true] %s15
      %18 = dma.hbm_to_vmem [thread:$0]  %s14, 64, %s16, [#allocation3]
    $region5: #{tpu_custom_call.1} parent=1 // pred_fallthru
      _
    // Predicated region
    $region6: #{tpu_custom_call.1} parent=1 // pred_check
      _
    $region7: #{tpu_custom_call.1} parent=1 // pred_check_branch
      %20 = sbr.rel (0) target = $region9
    $region8: #{tpu_custom_call.1} parent=1 // pred_region
      %22 = dma.done [#allocation3], 64
    $region9: #{tpu_custom_call.1} parent=1 // pred_fallthru
      _
    %v23 = vld [vmem:[#allocation2] sm:$0xf]
    %v24 = vlaneseq
    %vm25 = vcmp.ge.s32.totalorder %v24, 0
    %vm26 = vcmp.lt.s32.totalorder %v24, 512
    %vm27 = vmand %vm25, %vm26
    %28 = vst.msk [vmem:[#allocation5] sm:$0xf] %vm27, %v23
    // Predicated region
    $region10: #{tpu_custom_call.1} parent=1 // pred_check
      _
    $region11: #{tpu_custom_call.1} parent=1 // pred_check_branch
      %30 = sbr.rel (0) target = $region13
    $region12: #{tpu_custom_call.1} parent=1 // pred_region
      %32 = vsyncadd [#allocation4], 0
      %s34 = sshll.u32 [#allocation5], 4
      %s35 = int_to_ptr.vmem [resolvable:$true] %s34
      %s36 = sshll.u32 %s1, 4
      %s37 = int_to_ptr.hbm [resolvable:$true] %s36
      %39 = dma.vmem_to_hbm [thread:$0]  %s35, 64, %s37, [#allocation4]
    $region13: #{tpu_custom_call.1} parent=1 // pred_fallthru
      _
    // Predicated region
    $region14: #{tpu_custom_call.1} parent=1 // pred_check
      _
    $region15: #{tpu_custom_call.1} parent=1 // pred_check_branch
      %41 = sbr.rel (0) target = $region17
    $region16: #{tpu_custom_call.1} parent=1 // pred_region
      %43 = dma.done [#allocation4], 64
    $region17: #{tpu_custom_call.1} parent=1 // pred_fallthru
      _
    %44 = vsyncpa [#allocation3], 1
    %45 = vsyncpa [#allocation4], 1

</llo_original>
